<compile_context>
chip_gen: v6e
topology: v6e:2x2x1
jax: 0.10.0
libtpu: 0.0.40
codegen_flags: <defaults>
</compile_context>

<pallas_src>
import functools

import jax
import jax.numpy as jnp
from jax import lax
from jax.experimental import pallas as pl
from jax.experimental.pallas import tpu as pltpu

LANE = 128
SUBLANE = 8
MAX_TILE_N = 2048


def _cdiv(a, b):
    return -(-a // b)


def _round_up(a, m):
    return _cdiv(a, m) * m


def _round_down(a, m):
    return (a // m) * m


# ---------------------------------------------------------------------------
# Kernels
# ---------------------------------------------------------------------------
def _bn_onepass_kernel(x_ref, gamma_ref, beta_ref, out_ref, *, eps):
    """Full-batch column strip: stats + normalize in one pass (f32 accumulation)."""
    x = x_ref[...].astype(jnp.float32)                         # (B, tile_n)
    mean = jnp.mean(x, axis=0, keepdims=True)                  # (1, tile_n)
    mean_sq = jnp.mean(x * x, axis=0, keepdims=True)           # (1, tile_n)
    var = jnp.maximum(mean_sq - mean * mean, 0.0)              # clamp cancellation
    inv_std = lax.rsqrt(var + eps)                             # (1, tile_n)
    scale = gamma_ref[...].astype(jnp.float32) * inv_std       # (1, tile_n)
    shift = beta_ref[...].astype(jnp.float32) - mean * scale   # (1, tile_n)
    out_ref[...] = (x * scale + shift).astype(out_ref.dtype)


def _bn_stats_kernel(x_ref, sum_ref, sumsq_ref, *, n_batch, tile_b):
    """Pass 1 of the batch-tiled fallback: accumulate sum / sum-of-squares per column."""
    bi = pl.program_id(1)

    @pl.when(bi == 0)
    def _init():
        sum_ref[...] = jnp.zeros_like(sum_ref)
        sumsq_ref[...] = jnp.zeros_like(sumsq_ref)

    x = x_ref[...].astype(jnp.float32)                         # (tile_b, tile_n)
    row = lax.broadcasted_iota(jnp.int32, x.shape, 0)
    x = jnp.where(bi * tile_b + row < n_batch, x, 0.0)         # mask partial batch tile
    sum_ref[...] += jnp.sum(x, axis=0, keepdims=True)
    sumsq_ref[...] += jnp.sum(x * x, axis=0, keepdims=True)


def _bn_apply_kernel(x_ref, scale_ref, shift_ref, out_ref):
    """Pass 2 of the batch-tiled fallback: out = x * scale + shift."""
    x = x_ref[...].astype(jnp.float32)
    out_ref[...] = (x * scale_ref[...] + shift_ref[...]).astype(out_ref.dtype)


# ---------------------------------------------------------------------------
# Wrapper
# ---------------------------------------------------------------------------
def custom_batchnorm(x, gamma, beta, eps=1e-5, *, force_two_pass=False, batch_tile=None):
    """Batch norm over dim 0 of a (n_batch, n_neurons) array, like the PyTorch module."""
    assert x.ndim == 2, "expected input of shape (n_batch, n_neurons)"
    n_batch, n_neurons = x.shape
    assert gamma.shape == (n_neurons,)
    assert beta.shape == (n_neurons,)
    dsize = jnp.dtype(x.dtype).itemsize

    # ---- generation-aware VMEM limit / tiling budget -----------------------
    try:
        vmem_cap = int(pltpu.get_tpu_info().vmem_capacity_bytes)
    except Exception:
        vmem_cap = 64 * 1024 * 1024          # conservative (v7x-sized) fallback
    vmem_limit = int(vmem_cap * 0.75)        # ~48 MiB on v7x, ~96 MiB on v5e/v6e
    budget = int(vmem_limit * 0.75)          # headroom for Mosaic internal scratch

    # Single-pass strip cost per lane column:
    #   2x double-buffered input + 2x double-buffered output + ~2 full-tile f32 temps.
    per_col_bytes = n_batch * (4 * dsize + 8)
    cols_budget = budget // per_col_bytes

    use_two_pass = force_two_pass or cols_budget < LANE

    # ---- padding decision (avoid it whenever possible) ---------------------
    aligned = (n_neurons % LANE == 0)
    whole_width_one_block = ((not use_two_pass) and (not aligned)
                             and n_neurons <= min(cols_budget, MAX_TILE_N))
    if aligned or whole_width_one_block:
        n_proc = n_neurons
        x_p = x
        gamma2d = gamma.reshape(1, n_neurons)
        beta2d = beta.reshape(1, n_neurons)
    else:
        # TODO(synk): a masked last-lane-tile kernel would remove even this pad/slice
        # copy for large unaligned widths; not worth the complexity for MLP layer sizes.
        n_proc = _round_up(n_neurons, LANE)
        pad = n_proc - n_neurons
        x_p = jnp.pad(x, ((0, 0), (0, pad)))
        gamma2d = jnp.pad(gamma, (0, pad), constant_values=1.0).reshape(1, n_proc)
        beta2d = jnp.pad(beta, (0, pad)).reshape(1, n_proc)

    if not use_two_pass:
        # ---- single-pass: full-batch column strips ------------------------
        if whole_width_one_block:
            tile_n = n_neurons
        else:
            tile_n = min(_round_down(cols_budget, LANE), MAX_TILE_N, n_proc)
            # v7x has 2 TensorCores: keep >= 2 steps on the parallel axis
            # (near-free extra step on the 1-TC v5e/v6e chips).
            if n_proc >= 2 * LANE:
                tile_n = min(tile_n, _round_up(_cdiv(n_proc, 2), LANE))
        grid = (_cdiv(n_proc, tile_n),)

        out_p = pl.pallas_call(
            functools.partial(_bn_onepass_kernel, eps=eps),
            out_shape=jax.ShapeDtypeStruct((n_batch, n_proc), x.dtype),
            grid=grid,
            in_specs=[
                pl.BlockSpec((n_batch, tile_n), lambda j: (0, j)),   # x strip
                pl.BlockSpec((1, tile_n), lambda j: (0, j)),         # gamma strip
                pl.BlockSpec((1, tile_n), lambda j: (0, j)),         # beta strip
            ],
            out_specs=pl.BlockSpec((n_batch, tile_n), lambda j: (0, j)),
            compiler_params=pltpu.CompilerParams(
                dimension_semantics=("parallel",),
                vmem_limit_bytes=vmem_limit),
            cost_estimate=pl.CostEstimate(
                flops=5 * n_batch * n_proc,
                transcendentals=n_proc,
                bytes_accessed=2 * n_batch * n_proc * dsize),
        )(x_p, gamma2d, beta2d)
    else:
        # ---- batch-tiled two-pass fallback (very large n_batch) -----------
        tile_n = min(512, n_proc)
        per_cell = 4 * dsize + 8
        tile_b = max(SUBLANE, _round_down(budget // (tile_n * per_cell), SUBLANE))
        if batch_tile is not None:
            tile_b = max(SUBLANE, _round_down(batch_tile, SUBLANE))
        if tile_b >= n_batch:
            tile_b = n_batch
        grid = (_cdiv(n_proc, tile_n), _cdiv(n_batch, tile_b))

        sums, sumsqs = pl.pallas_call(
            functools.partial(_bn_stats_kernel, n_batch=n_batch, tile_b=tile_b),
            out_shape=(jax.ShapeDtypeStruct((1, n_proc), jnp.float32),
                       jax.ShapeDtypeStruct((1, n_proc), jnp.float32)),
            grid=grid,
            in_specs=[pl.BlockSpec((tile_b, tile_n), lambda j, b: (b, j))],
            out_specs=(pl.BlockSpec((1, tile_n), lambda j, b: (0, j)),
                       pl.BlockSpec((1, tile_n), lambda j, b: (0, j))),
            compiler_params=pltpu.CompilerParams(
                dimension_semantics=("parallel", "arbitrary"),
                vmem_limit_bytes=vmem_limit),
            cost_estimate=pl.CostEstimate(
                flops=3 * n_batch * n_proc,
                transcendentals=0,
                bytes_accessed=n_batch * n_proc * dsize),
        )(x_p)

        mean = sums / n_batch                                    # (1, n_proc) f32
        var = jnp.maximum(sumsqs / n_batch - mean * mean, 0.0)
        inv_std = lax.rsqrt(var + eps)
        scale = gamma2d.astype(jnp.float32) * inv_std
        shift = beta2d.astype(jnp.float32) - mean * scale

        out_p = pl.pallas_call(
            _bn_apply_kernel,
            out_shape=jax.ShapeDtypeStruct((n_batch, n_proc), x.dtype),
            grid=grid,
            in_specs=[
                pl.BlockSpec((tile_b, tile_n), lambda j, b: (b, j)),
                pl.BlockSpec((1, tile_n), lambda j, b: (0, j)),
                pl.BlockSpec((1, tile_n), lambda j, b: (0, j)),
            ],
            out_specs=pl.BlockSpec((tile_b, tile_n), lambda j, b: (b, j)),
            compiler_params=pltpu.CompilerParams(
                dimension_semantics=("parallel", "parallel"),
                vmem_limit_bytes=vmem_limit),
            cost_estimate=pl.CostEstimate(
                flops=2 * n_batch * n_proc,
                transcendentals=n_proc,
                bytes_accessed=2 * n_batch * n_proc * dsize),
        )(x_p, scale, shift)

    if n_proc != n_neurons:
        out_p = out_p[:, :n_neurons]
    return out_p


# ---------------------------------------------------------------------------
# Self-test
# ---------------------------------------------------------------------------
if __name__ == "__main__":
    eps = 1e-5
    key = jax.random.PRNGKey(0)
    k1, k2, k3, k4, k5 = jax.random.split(key, 5)

    def reference(x, gamma, beta, eps):
        mean = jnp.mean(x, axis=0)
        var = jnp.mean((x - mean) ** 2, axis=0)     # biased (unbiased=False)
        x_hat = (x - mean) / jnp.sqrt(var + eps)
        return gamma * x_hat + beta

    # Case 1: module-sized example (n_batch=8, n_neurons=32), default gamma/beta init
    # (ones / zeros) -> unaligned width handled as a single full-width block, no padding.
    x1 = jax.random.normal(k1, (8, 32), dtype=jnp.float32)
    g1 = jnp.ones((32,), dtype=jnp.float32)
    b1 = jnp.zeros((32,), dtype=jnp.float32)
    out1 = jax.block_until_ready(custom_batchnorm(x1, g1, b1, eps=eps))
    assert out1.shape == (8, 32)
    assert jnp.allclose(out1, reference(x1, g1, b1, eps), atol=1e-5, rtol=1e-5)

    # Case 2: lane-aligned width, nontrivial gamma/beta -> no padding, >=2 parallel steps.
    x2 = jax.random.normal(k2, (16, 256), dtype=jnp.float32)
    g2 = 1.0 + 0.1 * jax.random.normal(k3, (256,), dtype=jnp.float32)
    b2 = 0.1 * jax.random.normal(k4, (256,), dtype=jnp.float32)
    out2 = jax.block_until_ready(custom_batchnorm(x2, g2, b2, eps=eps))
    assert jnp.allclose(out2, reference(x2, g2, b2, eps), atol=1e-5, rtol=1e-5)

    # Case 3: force the batch-tiled two-pass fallback with a partial last batch tile.
    x3 = jax.random.normal(k5, (20, 384), dtype=jnp.float32)
    g3 = jnp.ones((384,), dtype=jnp.float32)
    b3 = jnp.zeros((384,), dtype=jnp.float32)
    out3 = jax.block_until_ready(
        custom_batchnorm(x3, g3, b3, eps=eps, force_two_pass=True, batch_tile=8))
    assert jnp.allclose(out3, reference(x3, g3, b3, eps), atol=1e-5, rtol=1e-5)

    print("KERNEL_OK")
</pallas_src>

<mosaic_0001>
module attributes {stable_mosaic.version = 11 : i64} {
  func.func @_bn_onepass_kernel(%arg0: i32, %arg1: memref<8x32xf32, #tpu.memory_space<vmem>>, %arg2: memref<1x32xf32, #tpu.memory_space<vmem>>, %arg3: memref<1x32xf32, #tpu.memory_space<vmem>>, %arg4: memref<8x32xf32, #tpu.memory_space<vmem>>) attributes {dimension_semantics = [#tpu.dimension_semantics<parallel>], iteration_bounds = array<i64: 1>, scalar_prefetch = 0 : i64, scratch_operands = 0 : i64, tpu.core_type = #tpu.core_type<tc>, window_params = [{transform_indices = @transform_0, window_bounds = array<i64: 8, 32>}, {transform_indices = @transform_1, window_bounds = array<i64: 1, 32>}, {transform_indices = @transform_2, window_bounds = array<i64: 1, 32>}, {transform_indices = @transform_3, window_bounds = array<i64: 8, 32>}]} {
    %c0 = arith.constant 0 : index
    %c0_0 = arith.constant 0 : index
    %0 = vector.load %arg1[%c0, %c0_0] : memref<8x32xf32, #tpu.memory_space<vmem>>, vector<8x32xf32>
    %cst = arith.constant dense<0.000000e+00> : vector<32xf32>
    %1 = vector.multi_reduction <add>, %0, %cst [0] : vector<8x32xf32> to vector<32xf32>
    %2 = vector.shape_cast %1 : vector<32xf32> to vector<1x32xf32>
    %cst_1 = arith.constant 8.000000e+00 : f32
    %3 = vector.broadcast %cst_1 : f32 to vector<1x32xf32>
    %4 = arith.divf %2, %3 : vector<1x32xf32>
    %5 = arith.mulf %0, %0 : vector<8x32xf32>
    %cst_2 = arith.constant dense<0.000000e+00> : vector<32xf32>
    %6 = vector.multi_reduction <add>, %5, %cst_2 [0] : vector<8x32xf32> to vector<32xf32>
    %7 = vector.shape_cast %6 : vector<32xf32> to vector<1x32xf32>
    %cst_3 = arith.constant 8.000000e+00 : f32
    %8 = vector.broadcast %cst_3 : f32 to vector<1x32xf32>
    %9 = arith.divf %7, %8 : vector<1x32xf32>
    %10 = arith.mulf %4, %4 : vector<1x32xf32>
    %11 = arith.subf %9, %10 : vector<1x32xf32>
    %cst_4 = arith.constant 0.000000e+00 : f32
    %12 = vector.broadcast %cst_4 : f32 to vector<1x32xf32>
    %13 = arith.maximumf %11, %12 : vector<1x32xf32>
    %cst_5 = arith.constant 9.99999974E-6 : f32
    %14 = vector.broadcast %cst_5 : f32 to vector<1x32xf32>
    %15 = arith.addf %13, %14 : vector<1x32xf32>
    %16 = math.rsqrt %15 : vector<1x32xf32>
    %c0_6 = arith.constant 0 : index
    %c0_7 = arith.constant 0 : index
    %17 = vector.load %arg2[%c0_6, %c0_7] : memref<1x32xf32, #tpu.memory_space<vmem>>, vector<1x32xf32>
    %18 = arith.mulf %17, %16 : vector<1x32xf32>
    %c0_8 = arith.constant 0 : index
    %c0_9 = arith.constant 0 : index
    %19 = vector.load %arg3[%c0_8, %c0_9] : memref<1x32xf32, #tpu.memory_space<vmem>>, vector<1x32xf32>
    %20 = arith.mulf %4, %18 : vector<1x32xf32>
    %21 = arith.subf %19, %20 : vector<1x32xf32>
    %22 = vector.broadcast %18 : vector<1x32xf32> to vector<8x32xf32>
    %23 = arith.mulf %0, %22 : vector<8x32xf32>
    %24 = vector.broadcast %21 : vector<1x32xf32> to vector<8x32xf32>
    %25 = arith.addf %23, %24 : vector<8x32xf32>
    %c0_10 = arith.constant 0 : index
    %c0_11 = arith.constant 0 : index
    %26 = vector.load %arg4[%c0_10, %c0_11] : memref<8x32xf32, #tpu.memory_space<vmem>>, vector<8x32xf32>
    tpu.vector_store %arg4[%c0_10, %c0_11], %25 {strides = array<i32>} : memref<8x32xf32, #tpu.memory_space<vmem>>, vector<8x32xf32>,
    return
  }
  func.func @transform_0(%arg0: i32) -> (i32, i32) {
    %c0_i32 = arith.constant 0 : i32
    %c0_i32_0 = arith.constant 0 : i32
    return %c0_i32, %arg0 : i32, i32
  }
  func.func @transform_1(%arg0: i32) -> (i32, i32) {
    %c0_i32 = arith.constant 0 : i32
    %c0_i32_0 = arith.constant 0 : i32
    return %c0_i32, %arg0 : i32, i32
  }
  func.func @transform_2(%arg0: i32) -> (i32, i32) {
    %c0_i32 = arith.constant 0 : i32
    %c0_i32_0 = arith.constant 0 : i32
    return %c0_i32, %arg0 : i32, i32
  }
  func.func @transform_3(%arg0: i32) -> (i32, i32) {
    %c0_i32 = arith.constant 0 : i32
    %c0_i32_0 = arith.constant 0 : i32
    return %c0_i32, %arg0 : i32, i32
  }
}

</mosaic_0001>

<llo_original>
// kernel: tpu_custom_call.1
$region0: #{tpu_custom_call.1}
  #allocation0 [shape = 'u32[]', space=smem, size = 0x4, offset = 0x4, fixed_abs, tag = 'smem constant byte address 0x4 - core index']
  #allocation1 [shape = 'u32[144,128]{1,0:T(1,128)}', space=vmem, size = 0x12000, scoped, tag = 'internal scratch']
  %s0 = inlined_call_operand.hbm [shape: f32[8,32], index: 0, kind: input, shape index: {}]
  %s1 = inlined_call_operand.vmem [shape: f32[1,32], index: 1, kind: input, shape index: {}]
  %s2 = inlined_call_operand.vmem [shape: f32[1,32], index: 2, kind: input, shape index: {}]
  %s3 = inlined_call_operand.hbm [shape: f32[8,32], index: 3, kind: output, shape index: {}]
  %s4 = sld [smem:[#allocation0]]
  $region26: #{tpu_custom_call.1} parent=0
    _
  %s6 = ssub.s32 1, %s4
  %s7 = scalar_select 0, %s6, %s4
  $region1: #{tpu_custom_call.1} parent=0
    #allocation2 [shape = 'u8[4096]{0}', space=vmem, size = 0x1000, scoped, tag = 'input window, operand 0, single buffered']
    #allocation3 [shape = 's32[1]{0}', space=sflag, size = 0x4, scoped, tag = 'scoped memory for tpu_custom_call.1']
    #allocation4 [shape = 's32[1]{0}', space=sflag, size = 0x4, scoped, tag = 'scoped memory for tpu_custom_call.1']
    #allocation5 [shape = 'u8[4096]{0}', space=vmem, size = 0x1000, scoped, tag = 'output window, operand 0, single buffered']
    %8 = vsyncpa [#allocation3], 0
    %9 = vsyncpa [#allocation4], 0
    // Predicated region
    $region2: #{tpu_custom_call.1} parent=1 // pred_check
      _
    $region3: #{tpu_custom_call.1} parent=1 // pred_check_branch
      %11 = sbr.rel (0) target = $region5
    $region4: #{tpu_custom_call.1} parent=1 // pred_region
      %s13 = ssub.s32 128, 128
      %14 = vsyncadd [#allocation3], %s13
      %s16 = sshll.u32 [#allocation2], 4
      %s17 = int_to_ptr.vmem [resolvable:$true] %s16
      %19 = dma.hbm_to_vmem [thread:$0]  %s0, 128, %s17, [#allocation3]
    $region5: #{tpu_custom_call.1} parent=1 // pred_fallthru
      _
    // Predicated region
    $region6: #{tpu_custom_call.1} parent=1 // pred_check
      _
    $region7: #{tpu_custom_call.1} parent=1 // pred_check_branch
      %21 = sbr.rel (0) target = $region9
    $region8: #{tpu_custom_call.1} parent=1 // pred_region
      _
    $region9: #{tpu_custom_call.1} parent=1 // pred_fallthru
      _
    // Predicated region
    $region10: #{tpu_custom_call.1} parent=1 // pred_check
      _
    $region11: #{tpu_custom_call.1} parent=1 // pred_check_branch
      %23 = sbr.rel (0) target = $region13
    $region12: #{tpu_custom_call.1} parent=1 // pred_region
      _
    $region13: #{tpu_custom_call.1} parent=1 // pred_fallthru
      _
    // Predicated region
    $region14: #{tpu_custom_call.1} parent=1 // pred_check
      _
    $region15: #{tpu_custom_call.1} parent=1 // pred_check_branch
      %25 = sbr.rel (0) target = $region17
    $region16: #{tpu_custom_call.1} parent=1 // pred_region
      %26 = dma.done [#allocation3], 128
    $region17: #{tpu_custom_call.1} parent=1 // pred_fallthru
      _
    %v27 = vld [vmem:[#allocation2] sm:$0xff]
    %vm28 = vcmask 261120
    %v29 = vsel %vm28, %v27, 0.0
    %v30 = vrot.slane %v29, 4
    %v31 = vadd.f32 %v29, %v30
    %v32 = vrot.slane %v31, 2
    %v33 = vadd.f32 %v31, %v32
    %v34 = vrot.slane %v33, 1
    %v35 = vadd.f32 %v33, %v34
    %v36 = vrcp.pop 8.0
    %v37 = vmul.f32 %v35, %v36
    %v38 = vmul.f32 %v27, %v27
    %v39 = vsel %vm28, %v38, 0.0
    %v40 = vrot.slane %v39, 4
    %v41 = vadd.f32 %v39, %v40
    %v42 = vrot.slane %v41, 2
    %v43 = vadd.f32 %v41, %v42
    %v44 = vrot.slane %v43, 1
    %v45 = vadd.f32 %v43, %v44
    %v46 = vmul.f32 %v45, %v36
    %v47 = vmul.f32 %v37, %v37
    %v48 = vsub.f32 %v46, %v47
    %v49 = vmax.f32 %v48, 0.0
    %v50 = vadd.f32 %v49, 1e-05
    %v51 = vrsqrt.pop %v50
    %v52 = vld [vmem:[%s1] sm:$0x1]
    %v53 = vmul.f32 %v52, %v51
    %v54 = vld [vmem:[%s2] sm:$0x1]
    %v55 = vmul.f32 %v37, %v53
    %v56 = vsub.f32 %v54, %v55
    %v58 = vlaneseq
    %v59 = vshrl.u32 %v58, 7
    %v60 = vsub.s32 0, %v59
    %v61 = vrot.slane %v53, %v60
    %v63 = vmul.f32 %v27, %v61
    %v65 = vlaneseq
    %v66 = vshrl.u32 %v65, 7
    %v67 = vsub.s32 0, %v66
    %v68 = vrot.slane %v56, %v67
    %v70 = vadd.f32 %v63, %v68
    %71 = vst.msk [vmem:[#allocation5] sm:$0xff] %vm28, %v70
    // Predicated region
    $region18: #{tpu_custom_call.1} parent=1 // pred_check
      _
    $region19: #{tpu_custom_call.1} parent=1 // pred_check_branch
      %73 = sbr.rel (0) target = $region21
    $region20: #{tpu_custom_call.1} parent=1 // pred_region
      %s75 = ssub.s32 128, 128
      %76 = vsyncadd [#allocation4], %s75
      %s78 = sshll.u32 [#allocation5], 4
      %s79 = int_to_ptr.vmem [resolvable:$true] %s78
      %81 = dma.vmem_to_hbm [thread:$0]  %s79, 128, %s3, [#allocation4]
    $region21: #{tpu_custom_call.1} parent=1 // pred_fallthru
      _
    // Predicated region
    $region22: #{tpu_custom_call.1} parent=1 // pred_check
      _
    $region23: #{tpu_custom_call.1} parent=1 // pred_check_branch
      %83 = sbr.rel (0) target = $region25
    $region24: #{tpu_custom_call.1} parent=1 // pred_region
      %84 = dma.done [#allocation4], 128
    $region25: #{tpu_custom_call.1} parent=1 // pred_fallthru
      _
    %85 = vsyncpa [#allocation3], 1
    %86 = vsyncpa [#allocation4], 1

</llo_original>
